<compile_context>
chip_gen: v7x
topology: tpu7x:2x2x1
jax: 0.10.0
libtpu: 0.0.40
codegen_flags: <defaults>
</compile_context>

<pallas_src>
import functools

import jax
import jax.numpy as jnp
from jax.experimental import pallas as pl
from jax.experimental.pallas import tpu as pltpu


def _round_up(x: int, m: int) -> int:
    return ((x + m - 1) // m) * m


# Conservative VMEM sizing so the same config is safe on v7x (64 MiB physical).
# On v5e/v6e (128 MiB) these can be raised for larger panels / deeper buffering.
_VMEM_BUDGET_BYTES = 40 * 1024 * 1024   # double-buffered block working set
_VMEM_LIMIT_BYTES = 48 * 1024 * 1024    # scoped VMEM cap passed to Mosaic


def _gate_kernel(x_ref, h_ref, wx_ref, wh_ref, b_ref, o_ref, *, compute_dtype):
    """One (tm, tn) output tile: full-K dual matmul + bias + sigmoid."""
    cdt = compute_dtype
    # Two MXU dots, f32 accumulation; casts happen in-kernel (no wrapper copies).
    acc = jnp.dot(
        x_ref[...].astype(cdt), wx_ref[...].astype(cdt),
        preferred_element_type=jnp.float32,
    )
    acc = acc + jnp.dot(
        h_ref[...].astype(cdt), wh_ref[...].astype(cdt),
        preferred_element_type=jnp.float32,
    )
    # f32 epilogue: bias broadcast over batch rows + sigmoid (EUP), then store.
    acc = acc + b_ref[...].astype(jnp.float32)
    o_ref[...] = jax.nn.sigmoid(acc).astype(o_ref.dtype)


@functools.partial(
    jax.jit, static_argnames=("tm", "tn", "compute_dtype", "out_dtype")
)
def gate_forward(
    x,
    h,
    w_hx,
    w_hh,
    b_hh,
    *,
    tm: int = 256,
    tn: int = 512,
    compute_dtype=jnp.bfloat16,
    out_dtype=jnp.float32,   # set to jnp.bfloat16 if the consumer accepts it
):
    """sigmoid(x @ w_hx + h @ w_hh + b_hh) as a tiled Pallas TPU kernel."""
    batch, input_dim = x.shape
    hidden = w_hh.shape[1]

    # ---- N (output-column) tile: minimise padding waste ---------------------
    if hidden <= tn:
        tn_e, n_p = hidden, hidden            # one full-width tile, no padding
    else:
        best = None
        for c in (1024, 512, 256, 128):
            if c > tn:
                continue
            waste = _round_up(hidden, c) - hidden
            if best is None or waste < best[1] or (waste == best[1] and c > best[0]):
                best = (c, waste)
        tn_e = best[0]
        n_p = _round_up(hidden, tn_e)

    # ---- M (batch-row) tile --------------------------------------------------
    if batch <= tm:
        tm_e, m_p = batch, batch              # one full-height tile, no padding
    else:
        tm_e = tm                             # multiple of 8
        m_p = _round_up(batch, tm_e)

    # ---- keep the double-buffered working set inside the VMEM budget --------
    def _working_set(tm_b, tn_b):
        byt = (
            tm_b * input_dim * x.dtype.itemsize
            + tm_b * hidden * h.dtype.itemsize
            + input_dim * tn_b * w_hx.dtype.itemsize
            + hidden * tn_b * w_hh.dtype.itemsize
            + tn_b * 4
            + tm_b * tn_b * jnp.dtype(out_dtype).itemsize
        )
        return 2 * byt                        # double-buffered pipeline

    while _working_set(tm_e, tn_e) > _VMEM_BUDGET_BYTES and tm_e > 8:
        tm_e = max(8, _round_up(tm_e // 2, 8))
        m_p = batch if batch <= tm_e else _round_up(batch, tm_e)
    # TODO(synk): if K = input_dim + hidden is so large that full-K weight
    # panels still exceed the budget, reintroduce a K grid axis (split into an
    # x-segment and an h-segment via the index_map) with a resident f32 acc.

    # ---- zero-pad only when a dimension does not fit a full-extent block ----
    x_p = x if m_p == batch else jnp.pad(x, ((0, m_p - batch), (0, 0)))
    h_p = h if m_p == batch else jnp.pad(h, ((0, m_p - batch), (0, 0)))
    if n_p == hidden:
        wx_p, wh_p = w_hx, w_hh
        b_p = b_hh.reshape(1, hidden).astype(jnp.float32)
    else:
        pad_n = n_p - hidden
        wx_p = jnp.pad(w_hx, ((0, 0), (0, pad_n)))
        wh_p = jnp.pad(w_hh, ((0, 0), (0, pad_n)))
        b_p = jnp.pad(b_hh.reshape(1, hidden).astype(jnp.float32),
                      ((0, 0), (0, pad_n)))

    num_n = n_p // tn_e
    num_m = m_p // tm_e
    grid = (num_n, num_m)   # N outer, M inner -> weight DMA reused across M

    kernel = functools.partial(_gate_kernel, compute_dtype=compute_dtype)

    cost = pl.CostEstimate(
        flops=2 * m_p * (input_dim + hidden) * n_p,
        transcendentals=m_p * n_p,                        # sigmoid exp
        bytes_accessed=(
            # activations re-read once per N tile; weights read exactly once
            num_n * (x_p.size * x_p.dtype.itemsize + h_p.size * h_p.dtype.itemsize)
            + wx_p.size * wx_p.dtype.itemsize
            + wh_p.size * wh_p.dtype.itemsize
            + b_p.size * b_p.dtype.itemsize
            + m_p * n_p * jnp.dtype(out_dtype).itemsize
        ),
    )

    out_p = pl.pallas_call(
        kernel,
        out_shape=jax.ShapeDtypeStruct((m_p, n_p), out_dtype),
        grid_spec=pltpu.PrefetchScalarGridSpec(
            num_scalar_prefetch=0,
            grid=grid,
            in_specs=[
                pl.BlockSpec((tm_e, input_dim), lambda j, i: (i, 0)),   # x rows
                pl.BlockSpec((tm_e, hidden),    lambda j, i: (i, 0)),   # h rows
                pl.BlockSpec((input_dim, tn_e), lambda j, i: (0, j)),   # W_hx cols
                pl.BlockSpec((hidden, tn_e),    lambda j, i: (0, j)),   # W_hh cols
                pl.BlockSpec((1, tn_e),         lambda j, i: (0, j)),   # bias
            ],
            out_specs=pl.BlockSpec((tm_e, tn_e), lambda j, i: (i, j)),
        ),
        compiler_params=pltpu.CompilerParams(
            dimension_semantics=("parallel", "parallel"),
            vmem_limit_bytes=_VMEM_LIMIT_BYTES,
        ),
        cost_estimate=cost,
    )(x_p, h_p, wx_p, wh_p, b_p)

    if m_p == batch and n_p == hidden:
        return out_p
    return out_p[:batch, :hidden]

    # TODO(synk): when the gate runs inside a timestep loop, hoist the weight
    # handling out of the per-step call and add a leading time grid axis whose
    # weight index_maps ignore it so W_hx/W_hh stay VMEM-resident across steps.


def init_gate_params(key, input_dim, hidden_dim):
    """Deterministic init mirroring MyLinear's kaiming_normal_ (fan_in = dim 1)."""
    k1, k2 = jax.random.split(key)
    # hx: nonlinearity='sigmoid' -> gain = 1, fan_in = hidden_dim (tensor.size(1))
    std_hx = 1.0 / jnp.sqrt(hidden_dim)
    w_hx = std_hx * jax.random.normal(k1, (input_dim, hidden_dim), jnp.float32)
    # hh: nonlinearity='tanh' -> gain = 5/3, fan_in = hidden_dim
    std_hh = (5.0 / 3.0) / jnp.sqrt(hidden_dim)
    w_hh = std_hh * jax.random.normal(k2, (hidden_dim, hidden_dim), jnp.float32)
    b_hh = jnp.zeros((hidden_dim,), jnp.float32)
    return w_hx, w_hh, b_hh


if __name__ == "__main__":
    batch, input_dim, hidden_dim = 8, 16, 32

    key = jax.random.PRNGKey(0)
    kx, kh, kp = jax.random.split(key, 3)

    x = jax.random.normal(kx, (batch, input_dim), jnp.float32)
    h = jax.random.normal(kh, (batch, hidden_dim), jnp.float32)
    w_hx, w_hh, b_hh = init_gate_params(kp, input_dim, hidden_dim)

    # Reference in plain JAX (f32 end to end).
    ref = jax.nn.sigmoid(x @ w_hx + h @ w_hh + b_hh[None])

    # 1) f32 compute path: must match tightly.
    out_f32 = gate_forward(x, h, w_hx, w_hh, b_hh, compute_dtype=jnp.float32)
    out_f32 = jax.block_until_ready(out_f32)
    assert out_f32.shape == (batch, hidden_dim)
    assert jnp.allclose(out_f32, ref, atol=1e-5, rtol=1e-5)

    # 2) bf16 MXU fast path (default): looser tolerance from bf16 operands.
    out_bf16 = gate_forward(x, h, w_hx, w_hh, b_hh)
    out_bf16 = jax.block_until_ready(out_bf16)
    assert out_bf16.shape == (batch, hidden_dim)
    assert jnp.allclose(out_bf16, ref, atol=2e-2, rtol=2e-2)

    print("KERNEL_OK")
</pallas_src>

<mosaic_0001>
module attributes {stable_mosaic.version = 11 : i64} {
  func.func @_gate_kernel(%arg0: i32, %arg1: i32, %arg2: memref<8x16xf32, #tpu.memory_space<vmem>>, %arg3: memref<8x32xf32, #tpu.memory_space<vmem>>, %arg4: memref<16x32xf32, #tpu.memory_space<vmem>>, %arg5: memref<32x32xf32, #tpu.memory_space<vmem>>, %arg6: memref<1x32xf32, #tpu.memory_space<vmem>>, %arg7: memref<8x32xf32, #tpu.memory_space<vmem>>) attributes {dimension_semantics = [#tpu.dimension_semantics<parallel>, #tpu.dimension_semantics<parallel>], iteration_bounds = array<i64: 1, 1>, scalar_prefetch = 0 : i64, scratch_operands = 0 : i64, tpu.core_type = #tpu.core_type<tc>, window_params = [{transform_indices = @transform_0, window_bounds = array<i64: 8, 16>}, {transform_indices = @transform_1, window_bounds = array<i64: 8, 32>}, {transform_indices = @transform_2, window_bounds = array<i64: 16, 32>}, {transform_indices = @transform_3, window_bounds = array<i64: 32, 32>}, {transform_indices = @transform_4, window_bounds = array<i64: 1, 32>}, {transform_indices = @transform_5, window_bounds = array<i64: 8, 32>}]} {
    %c0 = arith.constant 0 : index
    %c0_0 = arith.constant 0 : index
    %0 = vector.load %arg2[%c0, %c0_0] : memref<8x16xf32, #tpu.memory_space<vmem>>, vector<8x16xf32>
    %c0_1 = arith.constant 0 : index
    %c0_2 = arith.constant 0 : index
    %1 = vector.load %arg4[%c0_1, %c0_2] : memref<16x32xf32, #tpu.memory_space<vmem>>, vector<16x32xf32>
    %cst = arith.constant dense<0.000000e+00> : vector<8x32xf32>
    %2 = tpu.matmul %0, %1, %cst {dimension_numbers = #tpu.dot_dimension_numbers<[1], [0], [0], [1], [0, 0, 1, 1], [], []>} : vector<8x16xf32>, vector<16x32xf32>, vector<8x32xf32> -> vector<8x32xf32>
    %c0_3 = arith.constant 0 : index
    %c0_4 = arith.constant 0 : index
    %3 = vector.load %arg3[%c0_3, %c0_4] : memref<8x32xf32, #tpu.memory_space<vmem>>, vector<8x32xf32>
    %c0_5 = arith.constant 0 : index
    %c0_6 = arith.constant 0 : index
    %4 = vector.load %arg5[%c0_5, %c0_6] : memref<32x32xf32, #tpu.memory_space<vmem>>, vector<32x32xf32>
    %cst_7 = arith.constant dense<0.000000e+00> : vector<8x32xf32>
    %5 = tpu.matmul %3, %4, %cst_7 {dimension_numbers = #tpu.dot_dimension_numbers<[1], [0], [0], [1], [0, 0, 1, 1], [], []>} : vector<8x32xf32>, vector<32x32xf32>, vector<8x32xf32> -> vector<8x32xf32>
    %6 = arith.addf %2, %5 : vector<8x32xf32>
    %c0_8 = arith.constant 0 : index
    %c0_9 = arith.constant 0 : index
    %7 = vector.load %arg6[%c0_8, %c0_9] : memref<1x32xf32, #tpu.memory_space<vmem>>, vector<1x32xf32>
    %8 = vector.broadcast %7 : vector<1x32xf32> to vector<8x32xf32>
    %9 = arith.addf %6, %8 : vector<8x32xf32>
    %10 = arith.negf %9 : vector<8x32xf32>
    %11 = math.exp %10 : vector<8x32xf32>
    %cst_10 = arith.constant 1.000000e+00 : f32
    %12 = vector.broadcast %cst_10 : f32 to vector<8x32xf32>
    %13 = arith.addf %12, %11 : vector<8x32xf32>
    %14 = arith.divf %12, %13 : vector<8x32xf32>
    %c0_11 = arith.constant 0 : index
    %c0_12 = arith.constant 0 : index
    %15 = vector.load %arg7[%c0_11, %c0_12] : memref<8x32xf32, #tpu.memory_space<vmem>>, vector<8x32xf32>
    tpu.vector_store %arg7[%c0_11, %c0_12], %14 {strides = array<i32>} : memref<8x32xf32, #tpu.memory_space<vmem>>, vector<8x32xf32>,
    return
  }
  func.func @transform_0(%arg0: i32, %arg1: i32) -> (i32, i32) {
    %c0_i32 = arith.constant 0 : i32
    %c0_i32_0 = arith.constant 0 : i32
    return %arg1, %c0_i32 : i32, i32
  }
  func.func @transform_1(%arg0: i32, %arg1: i32) -> (i32, i32) {
    %c0_i32 = arith.constant 0 : i32
    %c0_i32_0 = arith.constant 0 : i32
    return %arg1, %c0_i32 : i32, i32
  }
  func.func @transform_2(%arg0: i32, %arg1: i32) -> (i32, i32) {
    %c0_i32 = arith.constant 0 : i32
    %c0_i32_0 = arith.constant 0 : i32
    return %c0_i32, %arg0 : i32, i32
  }
  func.func @transform_3(%arg0: i32, %arg1: i32) -> (i32, i32) {
    %c0_i32 = arith.constant 0 : i32
    %c0_i32_0 = arith.constant 0 : i32
    return %c0_i32, %arg0 : i32, i32
  }
  func.func @transform_4(%arg0: i32, %arg1: i32) -> (i32, i32) {
    %c0_i32 = arith.constant 0 : i32
    %c0_i32_0 = arith.constant 0 : i32
    return %c0_i32, %arg0 : i32, i32
  }
  func.func @transform_5(%arg0: i32, %arg1: i32) -> (i32, i32) {
    %c0_i32 = arith.constant 0 : i32
    return %arg1, %arg0 : i32, i32
  }
}

</mosaic_0001>

<llo_original>
// kernel: gate_forward.1
$region0: #{gate_forward.1}
  #allocation0 [shape = 'u32[]', space=smem, size = 0x4, offset = 0x4, fixed_abs, tag = 'smem constant byte address 0x4 - core index']
  #allocation1 [shape = 'u32[144,128]{1,0:T(1,128)}', space=vmem, size = 0x12000, scoped, tag = 'internal scratch']
  %s0 = inlined_call_operand.hbm [shape: f32[8,16], index: 0, kind: input, shape index: {}]
  %s1 = inlined_call_operand.hbm [shape: f32[8,32], index: 1, kind: input, shape index: {}]
  %s2 = inlined_call_operand.hbm [shape: f32[16,32], index: 2, kind: input, shape index: {}]
  %s3 = inlined_call_operand.hbm [shape: f32[32,32], index: 3, kind: input, shape index: {}]
  %s4 = inlined_call_operand.vmem [shape: f32[1,32], index: 4, kind: input, shape index: {}]
  %s5 = inlined_call_operand.hbm [shape: f32[8,32], index: 5, kind: output, shape index: {}]
  %s6 = sld [smem:[#allocation0]]
  $region46: #{gate_forward.1} parent=0
    _
  %s8 = ssub.s32 1, %s6
  %s9 = scalar_select 0, %s8, %s6
  $region1: #{gate_forward.1} parent=0
    #allocation2 [shape = 'u8[4096]{0}', space=vmem, size = 0x1000, scoped, tag = 'input window, operand 0, single buffered']
    #allocation3 [shape = 's32[1]{0}', space=sflag, size = 0x4, scoped, tag = 'scoped memory for gate_forward.1']
    #allocation4 [shape = 's32[1]{0}', space=sflag, size = 0x4, scoped, tag = 'scoped memory for gate_forward.1']
    #allocation5 [shape = 'u8[4096]{0}', space=vmem, size = 0x1000, scoped, tag = 'input window, operand 1, single buffered']
    #allocation6 [shape = 's32[1]{0}', space=sflag, size = 0x4, scoped, tag = 'scoped memory for gate_forward.1']
    #allocation7 [shape = 'u8[8192]{0}', space=vmem, size = 0x2000, scoped, tag = 'input window, operand 2, single buffered']
    #allocation8 [shape = 'u8[16384]{0}', space=vmem, size = 0x4000, scoped, tag = 'input window, operand 3, single buffered']
    #allocation9 [shape = 's32[1]{0}', space=sflag, size = 0x4, scoped, tag = 'scoped memory for gate_forward.1']
    #allocation10 [shape = 'u8[4096]{0}', space=vmem, size = 0x1000, scoped, tag = 'output window, operand 0, single buffered']
    %10 = vsyncpa [#allocation3], 0
    %11 = vsyncpa [#allocation6], 0
    %12 = vsyncpa [#allocation9], 0
    %13 = vsyncpa [#allocation4], 0
    // Predicated region
    $region2: #{gate_forward.1} parent=1 // pred_check
      _
    $region3: #{gate_forward.1} parent=1 // pred_check_branch
      %15 = sbr.rel (0) target = $region5
    $region4: #{gate_forward.1} parent=1 // pred_region
      %s17 = ssub.s32 128, 128
      %18 = vsyncadd [#allocation3], %s17
      %s20 = sshll.u32 [#allocation2], 4
      %s21 = int_to_ptr.vmem [resolvable:$true] %s20
      %23 = dma.hbm_to_vmem [thread:$0]  %s0, 128, %s21, [#allocation3]
    $region5: #{gate_forward.1} parent=1 // pred_fallthru
      _
    // Predicated region
    $region6: #{gate_forward.1} parent=1 // pred_check
      _
    $region7: #{gate_forward.1} parent=1 // pred_check_branch
      %25 = sbr.rel (0) target = $region9
    $region8: #{gate_forward.1} parent=1 // pred_region
      %s27 = ssub.s32 128, 128
      %28 = vsyncadd [#allocation6], %s27
      %s30 = sshll.u32 [#allocation5], 4
      %s31 = int_to_ptr.vmem [resolvable:$true] %s30
      %33 = dma.hbm_to_vmem [thread:$0]  %s1, 128, %s31, [#allocation6]
    $region9: #{gate_forward.1} parent=1 // pred_fallthru
      _
    // Predicated region
    $region10: #{gate_forward.1} parent=1 // pred_check
      _
    $region11: #{gate_forward.1} parent=1 // pred_check_branch
      %35 = sbr.rel (0) target = $region13
    $region12: #{gate_forward.1} parent=1 // pred_region
      %s37 = ssub.s32 256, 256
      %38 = vsyncadd [#allocation6], %s37
      %s39 = sshll.u32 [#allocation7], 4
      %s40 = int_to_ptr.vmem [resolvable:$true] %s39
      %45 = dma.hbm_to_vmem [thread:$0]  %s2, 256, %s40, [#allocation6], 128, 128, 8
    $region13: #{gate_forward.1} parent=1 // pred_fallthru
      _
    // Predicated region
    $region14: #{gate_forward.1} parent=1 // pred_check
      _
    $region15: #{gate_forward.1} parent=1 // pred_check_branch
      %47 = sbr.rel (0) target = $region17
    $region16: #{gate_forward.1} parent=1 // pred_region
      %s49 = ssub.s32 512, 512
      %50 = vsyncadd [#allocation9], %s49
      %s51 = sshll.u32 [#allocation8], 4
      %s52 = int_to_ptr.vmem [resolvable:$true] %s51
      %57 = dma.hbm_to_vmem [thread:$0]  %s3, 512, %s52, [#allocation9], 128, 128, 8
    $region17: #{gate_forward.1} parent=1 // pred_fallthru
      _
    // Predicated region
    $region18: #{gate_forward.1} parent=1 // pred_check
      _
    $region19: #{gate_forward.1} parent=1 // pred_check_branch
      %59 = sbr.rel (0) target = $region21
    $region20: #{gate_forward.1} parent=1 // pred_region
      _
    $region21: #{gate_forward.1} parent=1 // pred_fallthru
      _
    // Predicated region
    $region22: #{gate_forward.1} parent=1 // pred_check
      _
    $region23: #{gate_forward.1} parent=1 // pred_check_branch
      %61 = sbr.rel (0) target = $region25
    $region24: #{gate_forward.1} parent=1 // pred_region
      %62 = dma.done [#allocation3], 128
    $region25: #{gate_forward.1} parent=1 // pred_fallthru
      _
    // Predicated region
    $region26: #{gate_forward.1} parent=1 // pred_check
      _
    $region27: #{gate_forward.1} parent=1 // pred_check_branch
      %64 = sbr.rel (0) target = $region29
    $region28: #{gate_forward.1} parent=1 // pred_region
      %65 = dma.done [#allocation6], 128
    $region29: #{gate_forward.1} parent=1 // pred_fallthru
      _
    // Predicated region
    $region30: #{gate_forward.1} parent=1 // pred_check
      _
    $region31: #{gate_forward.1} parent=1 // pred_check_branch
      %67 = sbr.rel (0) target = $region33
    $region32: #{gate_forward.1} parent=1 // pred_region
      %68 = dma.done [#allocation6], 256
    $region33: #{gate_forward.1} parent=1 // pred_fallthru
      _
    // Predicated region
    $region34: #{gate_forward.1} parent=1 // pred_check
      _
    $region35: #{gate_forward.1} parent=1 // pred_check_branch
      %70 = sbr.rel (0) target = $region37
    $region36: #{gate_forward.1} parent=1 // pred_region
      %71 = dma.done [#allocation9], 512
    $region37: #{gate_forward.1} parent=1 // pred_fallthru
      _
    %v72 = vld [vmem:[#allocation2] sm:$0xff]
    %v73 = vld [vmem:[#allocation7] sm:$0xff]
    %v74 = vld [vmem:[#allocation7 + $0x8] sm:$0xff]
    %v75 = vld [vmem:[#allocation5] sm:$0xff]
    %v76 = vld [vmem:[#allocation8] sm:$0xff]
    %v77 = vld [vmem:[#allocation8 + $0x8] sm:$0xff]
    %v78 = vld [vmem:[#allocation8 + $0x10] sm:$0xff]
    %v79 = vld [vmem:[#allocation8 + $0x18] sm:$0xff]
    %vm80 = vcmask 261120
    %v82 = vsel %vm80, %v75, 0
    %84 = vmatprep.subr.mxu0 0.0
    %85 = vmatpush1.msra.mxu0 %v76
    %86 = vmatprep.subr.mxu0 0.0
    %87 = vmatpush1.msra.mxu0 %v77
    %88 = vmatprep.subr.mxu0 0.0
    %89 = vmatpush1.msra.mxu0 %v78
    %90 = vmatprep.subr.mxu0 0.0
    %91 = vmatpush1.msra.mxu0 %v79
    %92 = vmatprep.subr.mxu0 0.0
    %93 = vmatpush1.msra.mxu0 0.0
    %94 = vmatprep.subr.mxu0 0.0
    %95 = vmatpush1.msra.mxu0 0.0
    %96 = vmatprep.subr.mxu0 0.0
    %97 = vmatpush1.msra.mxu0 0.0
    %98 = vmatprep.subr.mxu0 0.0
    %99 = vmatpush1.msra.mxu0 0.0
    %100 = vmatprep.subr.mxu0 0.0
    %101 = vmatpush1.msra.mxu0 0.0
    %102 = vmatprep.subr.mxu0 0.0
    %103 = vmatpush1.msra.mxu0 0.0
    %104 = vmatprep.subr.mxu0 0.0
    %105 = vmatpush1.msra.mxu0 0.0
    %106 = vmatprep.subr.mxu0 0.0
    %107 = vmatpush1.msra.mxu0 0.0
    %108 = vmatprep.subr.mxu0 0.0
    %109 = vmatpush1.msra.mxu0 0.0
    %110 = vmatprep.subr.mxu0 0.0
    %111 = vmatpush1.msra.mxu0 0.0
    %112 = vmatprep.subr.mxu0 0.0
    %113 = vmatpush1.msra.mxu0 0.0
    %114 = vmatprep.subr.mxu0 0.0
    %115 = vmatpush1.msra.mxu0 0.0
    %116 = vmatprep.subr.mxu0 0.0
    %117 = vmatpush1.msra.mxu0 0.0
    %118 = vmatprep.subr.mxu0 0.0
    %119 = vmatpush1.msra.mxu0 0.0
    %120 = vmatprep.subr.mxu0 0.0
    %121 = vmatpush1.msra.mxu0 0.0
    %122 = vmatprep.subr.mxu0 0.0
    %123 = vmatpush1.msra.mxu0 0.0
    %124 = vmatprep.subr.mxu0 0.0
    %125 = vmatpush1.msra.mxu0 0.0
    %126 = vmatprep.subr.mxu0 0.0
    %127 = vmatpush1.msra.mxu0 0.0
    %128 = vmatprep.subr.mxu0 0.0
    %129 = vmatpush1.msra.mxu0 0.0
    %130 = vmatprep.subr.mxu0 0.0
    %131 = vmatpush1.msra.mxu0 0.0
    %132 = vmatprep.subr.mxu0 0.0
    %133 = vmatpush1.msra.mxu0 0.0
    %134 = vmatprep.subr.mxu0 0.0
    %135 = vmatpush1.msra.mxu0 0.0
    %136 = vmatprep.subr.mxu0 0.0
    %137 = vmatpush1.msra.mxu0 0.0
    %138 = vmatprep.subr.mxu0 0.0
    %139 = vmatpush1.msra.mxu0 0.0
    %140 = vmatprep.subr.mxu0 0.0
    %141 = vmatpush1.msra.mxu0 0.0
    %142 = vmatprep.subr.mxu0 0.0
    %143 = vmatpush1.msra.mxu0 0.0
    %144 = vmatprep.subr.mxu0 0.0
    %145 = vmatpush1.msra.mxu0 0.0
    %146 = vmatprep.subr.mxu0 0.0
    %147 = vmatpush1.msra.mxu0 0.0
    %148 = vmatprep.mubr.f32.mxu0 0.0
    %149 = vmatmul.mubr.f32.gmra.mrb[0].mxu0 %v82
    %v150 = vpop.f32.mrb[0].mxu0
    %v151 = vadd.f32 0.0, %v150
    %v152 = vpop.f32.mrb[0].mxu0
    %153 = vdwg.mxu0
    %vm154 = vcmask 130048
    %v156 = vsel %vm154, %v72, 0
    %158 = vmatprep.subr.mxu0 0.0
    %159 = vmatpush1.msra.mxu0 %v73
    %160 = vmatprep.subr.mxu0 0.0
    %161 = vmatpush1.msra.mxu0 %v74
    %162 = vmatprep.subr.mxu0 0.0
    %163 = vmatpush1.msra.mxu0 0.0
    %164 = vmatprep.subr.mxu0 0.0
    %165 = vmatpush1.msra.mxu0 0.0
    %166 = vmatprep.subr.mxu0 0.0
    %167 = vmatpush1.msra.mxu0 0.0
    %168 = vmatprep.subr.mxu0 0.0
    %169 = vmatpush1.msra.mxu0 0.0
    %170 = vmatprep.subr.mxu0 0.0
    %171 = vmatpush1.msra.mxu0 0.0
    %172 = vmatprep.subr.mxu0 0.0
    %173 = vmatpush1.msra.mxu0 0.0
    %174 = vmatprep.subr.mxu0 0.0
    %175 = vmatpush1.msra.mxu0 0.0
    %176 = vmatprep.subr.mxu0 0.0
    %177 = vmatpush1.msra.mxu0 0.0
    %178 = vmatprep.subr.mxu0 0.0
    %179 = vmatpush1.msra.mxu0 0.0
    %180 = vmatprep.subr.mxu0 0.0
    %181 = vmatpush1.msra.mxu0 0.0
    %182 = vmatprep.subr.mxu0 0.0
    %183 = vmatpush1.msra.mxu0 0.0
    %184 = vmatprep.subr.mxu0 0.0
    %185 = vmatpush1.msra.mxu0 0.0
    %186 = vmatprep.subr.mxu0 0.0
    %187 = vmatpush1.msra.mxu0 0.0
    %188 = vmatprep.subr.mxu0 0.0
    %189 = vmatpush1.msra.mxu0 0.0
    %190 = vmatprep.subr.mxu0 0.0
    %191 = vmatpush1.msra.mxu0 0.0
    %192 = vmatprep.subr.mxu0 0.0
    %193 = vmatpush1.msra.mxu0 0.0
    %194 = vmatprep.subr.mxu0 0.0
    %195 = vmatpush1.msra.mxu0 0.0
    %196 = vmatprep.subr.mxu0 0.0
    %197 = vmatpush1.msra.mxu0 0.0
    %198 = vmatprep.subr.mxu0 0.0
    %199 = vmatpush1.msra.mxu0 0.0
    %200 = vmatprep.subr.mxu0 0.0
    %201 = vmatpush1.msra.mxu0 0.0
    %202 = vmatprep.subr.mxu0 0.0
    %203 = vmatpush1.msra.mxu0 0.0
    %204 = vmatprep.subr.mxu0 0.0
    %205 = vmatpush1.msra.mxu0 0.0
    %206 = vmatprep.subr.mxu0 0.0
    %207 = vmatpush1.msra.mxu0 0.0
    %208 = vmatprep.subr.mxu0 0.0
    %209 = vmatpush1.msra.mxu0 0.0
    %210 = vmatprep.subr.mxu0 0.0
    %211 = vmatpush1.msra.mxu0 0.0
    %212 = vmatprep.subr.mxu0 0.0
    %213 = vmatpush1.msra.mxu0 0.0
    %214 = vmatprep.subr.mxu0 0.0
    %215 = vmatpush1.msra.mxu0 0.0
    %216 = vmatprep.subr.mxu0 0.0
    %217 = vmatpush1.msra.mxu0 0.0
    %218 = vmatprep.subr.mxu0 0.0
    %219 = vmatpush1.msra.mxu0 0.0
    %220 = vmatprep.subr.mxu0 0.0
    %221 = vmatpush1.msra.mxu0 0.0
    %222 = vmatprep.mubr.f32.mxu0 0.0
    %223 = vmatmul.mubr.f32.gmra.mrb[0].mxu0 %v156
    %v224 = vpop.f32.mrb[0].mxu0
    %v225 = vadd.f32 %v151, %v224
    %v226 = vpop.f32.mrb[0].mxu0
    %227 = vdwg.mxu0
    %v228 = vld [vmem:[%s4] sm:$0x1]
    %v230 = vlaneseq
    %v231 = vshrl.u32 %v230, 7
    %v232 = vsub.s32 0, %v231
    %v233 = vrot.slane %v228, %v232
    %v235 = vadd.f32 %v225, %v233
    %v236 = vxor.u32 %v235, 2147483648
    %v237 = vmul.f32 %v236, 1.442695
    %v238 = vpow.pop %v237
    %v239 = vadd.f32 %v238, 1.0
    %v240 = vrcp.pop %v239
    %v241 = vmul.f32 1.0, %v240
    %242 = vst.msk [vmem:[#allocation10] sm:$0xff] %vm80, %v241
    // Predicated region
    $region38: #{gate_forward.1} parent=1 // pred_check
      _
    $region39: #{gate_forward.1} parent=1 // pred_check_branch
      %244 = sbr.rel (0) target = $region41
    $region40: #{gate_forward.1} parent=1 // pred_region
      %s246 = ssub.s32 128, 128
      %247 = vsyncadd [#allocation4], %s246
      %s249 = sshll.u32 [#allocation10], 4
      %s250 = int_to_ptr.vmem [resolvable:$true] %s249
      %252 = dma.vmem_to_hbm [thread:$0]  %s250, 128, %s5, [#allocation4]
    $region41: #{gate_forward.1} parent=1 // pred_fallthru
      _
    // Predicated region
    $region42: #{gate_forward.1} parent=1 // pred_check
      _
    $region43: #{gate_forward.1} parent=1 // pred_check_branch
      %254 = sbr.rel (0) target = $region45
    $region44: #{gate_forward.1} parent=1 // pred_region
      %255 = dma.done [#allocation4], 128
    $region45: #{gate_forward.1} parent=1 // pred_fallthru
      _
    %256 = vsyncpa [#allocation3], 1
    %257 = vsyncpa [#allocation6], 1
    %258 = vsyncpa [#allocation9], 1
    %259 = vsyncpa [#allocation4], 1

</llo_original>
